<compile_context>
chip_gen: v6e
topology: v6e:2x2x1
jax: 0.10.0
libtpu: 0.0.40
codegen_flags: <defaults>
</compile_context>

<pallas_src>
import functools

import jax
import jax.numpy as jnp
from jax.experimental import pallas as pl
from jax.experimental.pallas import tpu as pltpu


# ---------------------------------------------------------------------------
# Config (mirrors the fields the PyTorch module reads)
# ---------------------------------------------------------------------------
VOCAB_SIZE = 50
VOCAB_PAD = 64                                 # rounded up -> K = 4*64 = 256
EMBEDDING_DIM = 32
NUM_FILTERS = 16
FILTER_SIZES = (2, 3, 4)
OUTPUT_DIM = 4
PADDING_IDX = 1
UNK_IDX = 0
BATCH = 2
SEQ_LEN = 8
DROPOUT = 0.5  # eval mode -> identity

FS_MAX = max(FILTER_SIZES)
NUM_BRANCHES = len(FILTER_SIZES)
CAT_DIM = NUM_BRANCHES * NUM_FILTERS           # 48


# ---------------------------------------------------------------------------
# Fused Pallas kernel: one-hot gather+conv matmul -> ReLU/mask/max -> classifier
# ---------------------------------------------------------------------------
def _textcnn_fused_kernel(gid_ref, wg_ref, bconv_ref, wcls_ref, bcls_ref,
                          out_ref, *, B, S, F, filter_sizes, vocab_pad):
    """Whole TextCNN forward in one kernel.

    gid_ref:   (B*S, fs_max)      int32, k*Vp + token_id of tap k   [VMEM]
    wg_ref:    (fs_max*Vp, C)     fused embedding x conv weight     [VMEM]
    bconv_ref: (1, C)             packed conv bias                  [VMEM]
    wcls_ref:  (C, O)             classifier weight (pre-T)         [VMEM]
    bcls_ref:  (1, O)             classifier bias                   [VMEM]
    out_ref:   (B, O)             logits                            [VMEM]
    """
    fs_max = max(filter_sizes)
    C = len(filter_sizes) * F
    K = fs_max * vocab_pad
    BS = B * S

    # ---- 1) One-hot (per tap block) built from a lane iota: no scalar loop.
    # gid[r, k] lands in the disjoint column range [k*Vp, (k+1)*Vp), so the
    # OR of the fs_max compares is an exact multi-hot row.
    col = jax.lax.broadcasted_iota(jnp.int32, (BS, K), 1)
    gid = gid_ref[...]                                   # (BS, fs_max)
    hit = col == gid[:, 0:1]
    for k in range(1, fs_max):
        hit = hit | (col == gid[:, k:k + 1])
    onehot = hit.astype(jnp.float32)                     # (BS, K) = (16, 256)

    # ---- 2) Single MXU matmul = embedding gather + ALL conv branches -------
    # (bf16 inputs would cut MXU passes ~3x on v6e/v7x at scale; keep f32
    #  here for exactness and because v5e elementwise has no bf16.)
    scores = jnp.dot(onehot, wg_ref[...],
                     preferred_element_type=jnp.float32)  # (BS, C)
    scores = jnp.maximum(scores + bconv_ref[...], 0.0)    # bias + ReLU

    # ---- 3) Mask conv positions past each branch's valid range, then pool --
    # ReLU output >= 0, so zeroing invalid positions never changes the max.
    s_idx = jax.lax.broadcasted_iota(jnp.int32, (BS, C), 0) % S
    c_idx = jax.lax.broadcasted_iota(jnp.int32, (BS, C), 1)
    limit = jnp.zeros((BS, C), jnp.int32)
    for j, fs in enumerate(filter_sizes):
        in_branch = (c_idx >= j * F) & (c_idx < (j + 1) * F)
        limit = jnp.where(in_branch, S - fs + 1, limit)
    masked = jnp.where(s_idx < limit, scores, 0.0)

    # (BS, C) -> (B, S, C): split is exactly at the 8-sublane tile boundary.
    pooled = masked.reshape(B, S, C).max(axis=1)          # (B, C)

    # ---- 4) Dropout (eval mode) = identity; classifier ---------------------
    # TODO(synk): training-mode dropout would need pltpu.prng_* here.
    out_ref[...] = (
        jnp.dot(pooled, wcls_ref[...], preferred_element_type=jnp.float32)
        + bcls_ref[...]
    )


_VMEM = pl.BlockSpec(memory_space=pltpu.MemorySpace.VMEM)


def textcnn_forward(packed, sentences):
    """Single fused pallas_call: sentences + packed params -> logits."""
    B, S = sentences.shape

    # Tiny wrapper-side layout plumbing (19 int32s): tap-shifted token ids.
    # Out-of-range taps map to PADDING_IDX (zero embedding row); cross-batch
    # taps only ever feed conv positions that the validity mask discards.
    flat = sentences.reshape(B * S).astype(jnp.int32)
    padded = jnp.concatenate(
        [flat, jnp.full((FS_MAX - 1,), PADDING_IDX, dtype=jnp.int32)])
    taps = jnp.stack([padded[k:k + B * S] for k in range(FS_MAX)], axis=1)
    gid = taps + (jnp.arange(FS_MAX, dtype=jnp.int32) * VOCAB_PAD)[None, :]

    kernel = functools.partial(
        _textcnn_fused_kernel,
        B=B, S=S, F=NUM_FILTERS, filter_sizes=FILTER_SIZES,
        vocab_pad=VOCAB_PAD)

    # NOTE: at toy batch sizes a grid-less single invocation on one TC is
    # cheapest; for large B, switch to a ("parallel",) batch grid
    # (dimension_semantics for v7x's 2 TensorCores), keep >=256 rows per MXU
    # push, and emit a lane-dense output instead of this (B, 4) store.
    return pl.pallas_call(
        kernel,
        out_shape=jax.ShapeDtypeStruct((B, OUTPUT_DIM), jnp.float32),
        in_specs=[_VMEM, _VMEM, _VMEM, _VMEM, _VMEM],
        out_specs=_VMEM,
    )(gid, packed["wgather"], packed["bconv"], packed["wcls"], packed["bcls"])


# ---------------------------------------------------------------------------
# Parameters: PyTorch-format init + one-time packing for the fused kernel
# ---------------------------------------------------------------------------
def init_params(key):
    keys = jax.random.split(key, 2 + 2 * len(FILTER_SIZES) + 2)
    ki = iter(keys)

    # "pretrained" embeddings (synthetic, deterministic)
    emb = jax.random.normal(next(ki), (VOCAB_SIZE, EMBEDDING_DIM), jnp.float32)
    emb = emb.at[UNK_IDX].set(0.0)
    emb = emb.at[PADDING_IDX].set(0.0)

    convs = []
    for fs in FILTER_SIZES:
        # PyTorch Conv1d weight: (out_channels, in_channels, kernel_size)
        w = 0.1 * jax.random.normal(
            next(ki), (NUM_FILTERS, EMBEDDING_DIM, fs), jnp.float32)
        bias = 0.1 * jax.random.normal(next(ki), (NUM_FILTERS,), jnp.float32)
        convs.append((w, bias))

    # PyTorch Linear weight: (out_features, in_features)
    cw = 0.1 * jax.random.normal(next(ki), (OUTPUT_DIM, CAT_DIM), jnp.float32)
    cb = 0.1 * jax.random.normal(next(ki), (OUTPUT_DIM,), jnp.float32)

    return {"embedding": emb, "convs": convs, "classifier": (cw, cb)}


def pack_params(params):
    """One-time packing: done at init, not per forward pass."""
    E, F, Vp = EMBEDDING_DIM, NUM_FILTERS, VOCAB_PAD

    # Packed per-tap conv weight (fs_max*E, C) with zero blocks for taps
    # k >= fs_j of a branch.
    wconv = jnp.zeros((FS_MAX * E, CAT_DIM), jnp.float32)
    biases = []
    for j, ((w, b), fs) in enumerate(zip(params["convs"], FILTER_SIZES)):
        for k in range(fs):
            wconv = wconv.at[k * E:(k + 1) * E, j * F:(j + 1) * F].set(
                w[:, :, k].T)                              # (E, F)
        biases.append(b)
    bconv = jnp.concatenate(biases).reshape(1, CAT_DIM)

    # Fuse the (zero-padded) embedding table into the conv weight so the
    # kernel's one-hot matmul does gather + conv in one MXU push:
    #   wgather[k*Vp + v, :] = emb_pad[v] @ wconv_tap_k          -> (256, 48)
    emb_pad = jnp.zeros((Vp, E), jnp.float32).at[:VOCAB_SIZE].set(
        params["embedding"])
    blocks = [emb_pad @ wconv[k * E:(k + 1) * E, :] for k in range(FS_MAX)]
    wgather = jnp.concatenate(blocks, axis=0)              # (FS_MAX*Vp, C)

    cw, cb = params["classifier"]
    return {
        "wgather": wgather,                                # (256, 48)
        "bconv": bconv,                                    # (1, 48)
        "wcls": cw.T,                                      # (48, 4)
        "bcls": cb.reshape(1, OUTPUT_DIM),                 # (1, 4)
    }


# ---------------------------------------------------------------------------
# Pure-JAX reference (PyTorch semantics) for correctness checking
# ---------------------------------------------------------------------------
def textcnn_reference(params, sentences):
    embedded = params["embedding"][sentences]              # (B, S, E)
    B, S, _ = embedded.shape
    pooled = []
    for (w, b), fs in zip(params["convs"], FILTER_SIZES):
        L = S - fs + 1
        acc = jnp.zeros((B, L, NUM_FILTERS), jnp.float32)
        for k in range(fs):
            acc = acc + jnp.einsum("ble,fe->blf",
                                   embedded[:, k:k + L, :], w[:, :, k])
        acc = acc + b[None, None, :]
        pooled.append(jnp.max(jax.nn.relu(acc), axis=1))
    cat = jnp.concatenate(pooled, axis=1)
    cw, cb = params["classifier"]
    return cat @ cw.T + cb[None, :]


if __name__ == "__main__":
    key = jax.random.PRNGKey(0)
    pkey, dkey = jax.random.split(key)
    params = init_params(pkey)
    packed = pack_params(params)

    sentences = jax.random.randint(
        dkey, (BATCH, SEQ_LEN), minval=0, maxval=VOCAB_SIZE, dtype=jnp.int32)

    fwd = jax.jit(textcnn_forward)
    logits = jax.block_until_ready(fwd(packed, sentences))
    ref = jax.block_until_ready(textcnn_reference(params, sentences))

    assert logits.shape == (BATCH, OUTPUT_DIM)
    if not jnp.allclose(logits, ref, rtol=1e-4, atol=1e-4):
        raise AssertionError("Pallas output does not match reference")

    print("KERNEL_OK")
</pallas_src>

<mosaic_0001>
module attributes {stable_mosaic.version = 11 : i64} {
  func.func @_textcnn_fused_kernel(%arg0: memref<16x4xi32, #tpu.memory_space<vmem>>, %arg1: memref<256x48xf32, #tpu.memory_space<vmem>>, %arg2: memref<1x48xf32, #tpu.memory_space<vmem>>, %arg3: memref<48x4xf32, #tpu.memory_space<vmem>>, %arg4: memref<1x4xf32, #tpu.memory_space<vmem>>, %arg5: memref<2x4xf32, #tpu.memory_space<vmem>>) attributes {dimension_semantics = [], scalar_prefetch = 0 : i64, scratch_operands = 0 : i64, tpu.core_type = #tpu.core_type<tc>} {
    %0 = tpu.iota {dimensions = array<i32: 1>} : vector<16x256xi32>
    %c0 = arith.constant 0 : index
    %c0_0 = arith.constant 0 : index
    %1 = vector.load %arg0[%c0, %c0_0] : memref<16x4xi32, #tpu.memory_space<vmem>>, vector<16x4xi32>
    %2 = vector.extract_strided_slice %1 {offsets = [0, 0], sizes = [16, 1], strides = [1, 1]} : vector<16x4xi32> to vector<16x1xi32>
    %3 = vector.broadcast %2 : vector<16x1xi32> to vector<16x256xi32>
    %4 = arith.cmpi eq, %0, %3 : vector<16x256xi32>
    %5 = vector.extract_strided_slice %1 {offsets = [0, 1], sizes = [16, 1], strides = [1, 1]} : vector<16x4xi32> to vector<16x1xi32>
    %6 = vector.broadcast %5 : vector<16x1xi32> to vector<16x256xi32>
    %7 = arith.cmpi eq, %0, %6 : vector<16x256xi32>
    %8 = arith.ori %4, %7 : vector<16x256xi1>
    %9 = vector.extract_strided_slice %1 {offsets = [0, 2], sizes = [16, 1], strides = [1, 1]} : vector<16x4xi32> to vector<16x1xi32>
    %10 = vector.broadcast %9 : vector<16x1xi32> to vector<16x256xi32>
    %11 = arith.cmpi eq, %0, %10 : vector<16x256xi32>
    %12 = arith.ori %8, %11 : vector<16x256xi1>
    %13 = vector.extract_strided_slice %1 {offsets = [0, 3], sizes = [16, 1], strides = [1, 1]} : vector<16x4xi32> to vector<16x1xi32>
    %14 = vector.broadcast %13 : vector<16x1xi32> to vector<16x256xi32>
    %15 = arith.cmpi eq, %0, %14 : vector<16x256xi32>
    %16 = arith.ori %12, %15 : vector<16x256xi1>
    %17 = arith.extui %16 : vector<16x256xi1> to vector<16x256xi32>
    %18 = arith.sitofp %17 : vector<16x256xi32> to vector<16x256xf32>
    %c0_1 = arith.constant 0 : index
    %c0_2 = arith.constant 0 : index
    %19 = vector.load %arg1[%c0_1, %c0_2] : memref<256x48xf32, #tpu.memory_space<vmem>>, vector<256x48xf32>
    %cst = arith.constant dense<0.000000e+00> : vector<16x48xf32>
    %20 = tpu.matmul %18, %19, %cst {dimension_numbers = #tpu.dot_dimension_numbers<[1], [0], [0], [1], [0, 0, 1, 1], [], []>} : vector<16x256xf32>, vector<256x48xf32>, vector<16x48xf32> -> vector<16x48xf32>
    %c0_3 = arith.constant 0 : index
    %c0_4 = arith.constant 0 : index
    %21 = vector.load %arg2[%c0_3, %c0_4] : memref<1x48xf32, #tpu.memory_space<vmem>>, vector<1x48xf32>
    %22 = vector.broadcast %21 : vector<1x48xf32> to vector<16x48xf32>
    %23 = arith.addf %20, %22 : vector<16x48xf32>
    %cst_5 = arith.constant 0.000000e+00 : f32
    %24 = vector.broadcast %cst_5 : f32 to vector<16x48xf32>
    %25 = arith.maximumf %23, %24 : vector<16x48xf32>
    %26 = tpu.iota {dimensions = array<i32: 0>} : vector<16x48xi32>
    %c8_i32 = arith.constant 8 : i32
    %c0_i32 = arith.constant 0 : i32
    %27 = arith.cmpi eq, %c8_i32, %c0_i32 : i32
    %c1_i32 = arith.constant 1 : i32
    %28 = arith.select %27, %c1_i32, %c8_i32 : i32
    %29 = vector.broadcast %28 : i32 to vector<16x48xi32>
    %30 = arith.remsi %26, %29 : vector<16x48xi32>
    %c0_i32_6 = arith.constant 0 : i32
    %31 = vector.broadcast %c0_i32_6 : i32 to vector<16x48xi32>
    %32 = arith.cmpi ne, %30, %31 : vector<16x48xi32>
    %c0_i32_7 = arith.constant 0 : i32
    %33 = vector.broadcast %c0_i32_7 : i32 to vector<16x48xi32>
    %34 = arith.cmpi slt, %30, %33 : vector<16x48xi32>
    %c0_i32_8 = arith.constant 0 : i32
    %35 = arith.cmpi slt, %28, %c0_i32_8 : i32
    %36 = vector.broadcast %35 : i1 to vector<16x48xi1>
    %37 = vector.broadcast %36 : vector<16x48xi1> to vector<16x48xi1>
    %38 = arith.xori %34, %37 : vector<16x48xi1>
    %39 = arith.andi %38, %32 : vector<16x48xi1>
    %40 = vector.broadcast %28 : i32 to vector<16x48xi32>
    %41 = arith.addi %30, %40 : vector<16x48xi32>
    %42 = arith.select %39, %41, %30 : vector<16x48xi1>, vector<16x48xi32>
    %43 = tpu.iota {dimensions = array<i32: 1>} : vector<16x48xi32>
    %c0_i32_9 = arith.constant 0 : i32
    %44 = vector.broadcast %c0_i32_9 : i32 to vector<16x48xi32>
    %c0_i32_10 = arith.constant 0 : i32
    %45 = vector.broadcast %c0_i32_10 : i32 to vector<16x48xi32>
    %46 = arith.cmpi sge, %43, %45 : vector<16x48xi32>
    %c16_i32 = arith.constant 16 : i32
    %47 = vector.broadcast %c16_i32 : i32 to vector<16x48xi32>
    %48 = arith.cmpi slt, %43, %47 : vector<16x48xi32>
    %49 = arith.andi %46, %48 : vector<16x48xi1>
    %c7_i32 = arith.constant 7 : i32
    %50 = vector.broadcast %c7_i32 : i32 to vector<16x48xi32>
    %51 = arith.select %49, %50, %44 : vector<16x48xi1>, vector<16x48xi32>
    %c16_i32_11 = arith.constant 16 : i32
    %52 = vector.broadcast %c16_i32_11 : i32 to vector<16x48xi32>
    %53 = arith.cmpi sge, %43, %52 : vector<16x48xi32>
    %c32_i32 = arith.constant 32 : i32
    %54 = vector.broadcast %c32_i32 : i32 to vector<16x48xi32>
    %55 = arith.cmpi slt, %43, %54 : vector<16x48xi32>
    %56 = arith.andi %53, %55 : vector<16x48xi1>
    %c6_i32 = arith.constant 6 : i32
    %57 = vector.broadcast %c6_i32 : i32 to vector<16x48xi32>
    %58 = arith.select %56, %57, %51 : vector<16x48xi1>, vector<16x48xi32>
    %c32_i32_12 = arith.constant 32 : i32
    %59 = vector.broadcast %c32_i32_12 : i32 to vector<16x48xi32>
    %60 = arith.cmpi sge, %43, %59 : vector<16x48xi32>
    %c48_i32 = arith.constant 48 : i32
    %61 = vector.broadcast %c48_i32 : i32 to vector<16x48xi32>
    %62 = arith.cmpi slt, %43, %61 : vector<16x48xi32>
    %63 = arith.andi %60, %62 : vector<16x48xi1>
    %c5_i32 = arith.constant 5 : i32
    %64 = vector.broadcast %c5_i32 : i32 to vector<16x48xi32>
    %65 = arith.select %63, %64, %58 : vector<16x48xi1>, vector<16x48xi32>
    %66 = arith.cmpi slt, %42, %65 : vector<16x48xi32>
    %cst_13 = arith.constant 0.000000e+00 : f32
    %67 = vector.broadcast %cst_13 : f32 to vector<16x48xf32>
    %68 = arith.select %66, %25, %67 : vector<16x48xi1>, vector<16x48xf32>
    %69 = vector.shape_cast %68 : vector<16x48xf32> to vector<2x8x48xf32>
    %cst_14 = arith.constant dense<0xFF800000> : vector<2x48xf32>
    %70 = vector.multi_reduction <maximumf>, %69, %cst_14 [1] : vector<2x8x48xf32> to vector<2x48xf32>
    %c0_15 = arith.constant 0 : index
    %c0_16 = arith.constant 0 : index
    %71 = vector.load %arg3[%c0_15, %c0_16] : memref<48x4xf32, #tpu.memory_space<vmem>>, vector<48x4xf32>
    %cst_17 = arith.constant dense<0.000000e+00> : vector<2x4xf32>
    %72 = tpu.matmul %70, %71, %cst_17 {dimension_numbers = #tpu.dot_dimension_numbers<[1], [0], [0], [1], [0, 0, 1, 1], [], []>} : vector<2x48xf32>, vector<48x4xf32>, vector<2x4xf32> -> vector<2x4xf32>
    %c0_18 = arith.constant 0 : index
    %c0_19 = arith.constant 0 : index
    %73 = vector.load %arg4[%c0_18, %c0_19] : memref<1x4xf32, #tpu.memory_space<vmem>>, vector<1x4xf32>
    %74 = vector.broadcast %73 : vector<1x4xf32> to vector<2x4xf32>
    %75 = arith.addf %72, %74 : vector<2x4xf32>
    %c0_20 = arith.constant 0 : index
    %c0_21 = arith.constant 0 : index
    %76 = vector.load %arg5[%c0_20, %c0_21] : memref<2x4xf32, #tpu.memory_space<vmem>>, vector<2x4xf32>
    tpu.vector_store %arg5[%c0_20, %c0_21], %75 {strides = array<i32>} : memref<2x4xf32, #tpu.memory_space<vmem>>, vector<2x4xf32>,
    return
  }
}

</mosaic_0001>

<llo_original>
// kernel: textcnn_forward.1
$region0: #{textcnn_forward.1}
  #allocation0 [shape = 'u32[]', space=smem, size = 0x4, offset = 0x4, fixed_abs, tag = 'smem constant byte address 0x4 - core index']
  #allocation1 [shape = 'u32[144,128]{1,0:T(1,128)}', space=vmem, size = 0x12000, scoped, tag = 'internal scratch']
  %s0 = inlined_call_operand.vmem [shape: s32[16,4], index: 0, kind: input, shape index: {}]
  %s1 = inlined_call_operand.vmem [shape: f32[256,48], index: 1, kind: input, shape index: {}]
  %s2 = inlined_call_operand.vmem [shape: f32[1,48], index: 2, kind: input, shape index: {}]
  %s3 = inlined_call_operand.vmem [shape: f32[48,4], index: 3, kind: input, shape index: {}]
  %s4 = inlined_call_operand.vmem [shape: f32[1,4], index: 4, kind: input, shape index: {}]
  %s5 = inlined_call_operand.hbm [shape: f32[2,4], index: 5, kind: output, shape index: {}]
  %s6 = sld [smem:[#allocation0]]
  $region30: #{textcnn_forward.1} parent=0
    _
  %s8 = ssub.s32 1, %s6
  %s9 = scalar_select 0, %s8, %s6
  $region1: #{textcnn_forward.1} parent=0
    #allocation2 [shape = 'u8[1024]{0}', space=vmem, size = 0x400, scoped, tag = 'output window, operand 0, single buffered']
    #allocation3 [shape = 's32[1]{0}', space=sflag, size = 0x4, scoped, tag = 'scoped memory for textcnn_forward.1']
    %10 = vsyncpa [#allocation3], 0
    // Predicated region
    $region2: #{textcnn_forward.1} parent=1 // pred_check
      _
    $region3: #{textcnn_forward.1} parent=1 // pred_check_branch
      %12 = sbr.rel (0) target = $region5
    $region4: #{textcnn_forward.1} parent=1 // pred_region
      _
    $region5: #{textcnn_forward.1} parent=1 // pred_fallthru
      _
    // Predicated region
    $region6: #{textcnn_forward.1} parent=1 // pred_check
      _
    $region7: #{textcnn_forward.1} parent=1 // pred_check_branch
      %14 = sbr.rel (0) target = $region9
    $region8: #{textcnn_forward.1} parent=1 // pred_region
      _
    $region9: #{textcnn_forward.1} parent=1 // pred_fallthru
      _
    // Predicated region
    $region10: #{textcnn_forward.1} parent=1 // pred_check
      _
    $region11: #{textcnn_forward.1} parent=1 // pred_check_branch
      %16 = sbr.rel (0) target = $region13
    $region12: #{textcnn_forward.1} parent=1 // pred_region
      _
    $region13: #{textcnn_forward.1} parent=1 // pred_fallthru
      _
    // Predicated region
    $region14: #{textcnn_forward.1} parent=1 // pred_check
      _
    $region15: #{textcnn_forward.1} parent=1 // pred_check_branch
      %18 = sbr.rel (0) target = $region17
    $region16: #{textcnn_forward.1} parent=1 // pred_region
      _
    $region17: #{textcnn_forward.1} parent=1 // pred_fallthru
      _
    // Predicated region
    $region18: #{textcnn_forward.1} parent=1 // pred_check
      _
    $region19: #{textcnn_forward.1} parent=1 // pred_check_branch
      %20 = sbr.rel (0) target = $region21
    $region20: #{textcnn_forward.1} parent=1 // pred_region
      _
    $region21: #{textcnn_forward.1} parent=1 // pred_fallthru
      _
    %v21 = vlaneseq
    %v22 = vand.u32 %v21, 127
    %v23 = vadd.s32 %v22, 128
    %v24 = vld [vmem:[%s0] sm:$0xff]
    %v25 = vld [vmem:[%s0 + $0x8] sm:$0xff]
    %26 = vset.pattern.permute.xlu0 0
    %27 = vperm.xlu0 %26, %v24
    %v28 = vpop.permute.xlu0 %27
    %29 = vset.pattern.permute.xlu0 0
    %30 = vperm.xlu0 %29, %v25
    %v31 = vpop.permute.xlu0 %30
    %vm32 = vcmp.eq.s32.totalorder %v22, %v28
    %vm33 = vcmp.eq.s32.totalorder %v23, %v28
    %vm34 = vcmp.eq.s32.totalorder %v22, %v31
    %vm35 = vcmp.eq.s32.totalorder %v23, %v31
    %36 = vset.pattern.permute.xlu0 1
    %37 = vperm.xlu0 %36, %v24
    %v38 = vpop.permute.xlu0 %37
    %39 = vset.pattern.permute.xlu0 1
    %40 = vperm.xlu0 %39, %v25
    %v41 = vpop.permute.xlu0 %40
    %vm42 = vcmp.eq.s32.totalorder %v22, %v38
    %vm43 = vcmp.eq.s32.totalorder %v23, %v38
    %vm44 = vcmp.eq.s32.totalorder %v22, %v41
    %vm45 = vcmp.eq.s32.totalorder %v23, %v41
    %vm46 = vmor %vm32, %vm42
    %vm47 = vmor %vm33, %vm43
    %vm48 = vmor %vm34, %vm44
    %vm49 = vmor %vm35, %vm45
    %50 = vset.pattern.permute.xlu0 2
    %51 = vperm.xlu0 %50, %v24
    %v52 = vpop.permute.xlu0 %51
    %53 = vset.pattern.permute.xlu0 2
    %54 = vperm.xlu0 %53, %v25
    %v55 = vpop.permute.xlu0 %54
    %vm56 = vcmp.eq.s32.totalorder %v22, %v52
    %vm57 = vcmp.eq.s32.totalorder %v23, %v52
    %vm58 = vcmp.eq.s32.totalorder %v22, %v55
    %vm59 = vcmp.eq.s32.totalorder %v23, %v55
    %vm60 = vmor %vm46, %vm56
    %vm61 = vmor %vm47, %vm57
    %vm62 = vmor %vm48, %vm58
    %vm63 = vmor %vm49, %vm59
    %64 = vset.pattern.permute.xlu0 3
    %65 = vperm.xlu0 %64, %v24
    %v66 = vpop.permute.xlu0 %65
    %67 = vset.pattern.permute.xlu0 3
    %68 = vperm.xlu0 %67, %v25
    %v69 = vpop.permute.xlu0 %68
    %vm70 = vcmp.eq.s32.totalorder %v22, %v66
    %vm71 = vcmp.eq.s32.totalorder %v23, %v66
    %vm72 = vcmp.eq.s32.totalorder %v22, %v69
    %vm73 = vcmp.eq.s32.totalorder %v23, %v69
    %vm74 = vmor %vm60, %vm70
    %vm75 = vmor %vm61, %vm71
    %vm76 = vmor %vm62, %vm72
    %vm77 = vmor %vm63, %vm73
    %v78 = vsel %vm74, 1, 0
    %v79 = vsel %vm75, 1, 0
    %v80 = vsel %vm76, 1, 0
    %v81 = vsel %vm77, 1, 0
    %v82 = vcvt.s32.f32 %v78
    %v83 = vcvt.s32.f32 %v79
    %v84 = vcvt.s32.f32 %v80
    %v85 = vcvt.s32.f32 %v81
    %v86 = vld [vmem:[%s1] sm:$0xff]
    %v87 = vld [vmem:[%s1 + $0x8] sm:$0xff]
    %v88 = vld [vmem:[%s1 + $0x10] sm:$0xff]
    %v89 = vld [vmem:[%s1 + $0x18] sm:$0xff]
    %v90 = vld [vmem:[%s1 + $0x20] sm:$0xff]
    %v91 = vld [vmem:[%s1 + $0x28] sm:$0xff]
    %v92 = vld [vmem:[%s1 + $0x30] sm:$0xff]
    %v93 = vld [vmem:[%s1 + $0x38] sm:$0xff]
    %v94 = vld [vmem:[%s1 + $0x40] sm:$0xff]
    %v95 = vld [vmem:[%s1 + $0x48] sm:$0xff]
    %v96 = vld [vmem:[%s1 + $0x50] sm:$0xff]
    %v97 = vld [vmem:[%s1 + $0x58] sm:$0xff]
    %v98 = vld [vmem:[%s1 + $0x60] sm:$0xff]
    %v99 = vld [vmem:[%s1 + $0x68] sm:$0xff]
    %v100 = vld [vmem:[%s1 + $0x70] sm:$0xff]
    %v101 = vld [vmem:[%s1 + $0x78] sm:$0xff]
    %v102 = vld [vmem:[%s1 + $0x80] sm:$0xff]
    %v103 = vld [vmem:[%s1 + $0x88] sm:$0xff]
    %v104 = vld [vmem:[%s1 + $0x90] sm:$0xff]
    %v105 = vld [vmem:[%s1 + $0x98] sm:$0xff]
    %v106 = vld [vmem:[%s1 + $0xa0] sm:$0xff]
    %v107 = vld [vmem:[%s1 + $0xa8] sm:$0xff]
    %v108 = vld [vmem:[%s1 + $0xb0] sm:$0xff]
    %v109 = vld [vmem:[%s1 + $0xb8] sm:$0xff]
    %v110 = vld [vmem:[%s1 + $0xc0] sm:$0xff]
    %v111 = vld [vmem:[%s1 + $0xc8] sm:$0xff]
    %v112 = vld [vmem:[%s1 + $0xd0] sm:$0xff]
    %v113 = vld [vmem:[%s1 + $0xd8] sm:$0xff]
    %v114 = vld [vmem:[%s1 + $0xe0] sm:$0xff]
    %v115 = vld [vmem:[%s1 + $0xe8] sm:$0xff]
    %v116 = vld [vmem:[%s1 + $0xf0] sm:$0xff]
    %v117 = vld [vmem:[%s1 + $0xf8] sm:$0xff]
    %v118 = vld [vmem:[%s2] sm:$0x1]
    %v120 = vlaneseq
    %v121 = vshrl.u32 %v120, 7
    %v122 = vsub.s32 0, %v121
    %v123 = vrot.slane %v118, %v122
    %125 = vmatprep.subr.mxu0 0.0
    %126 = vmatpush1.msra.mxu0 %v101
    %127 = vmatprep.subr.mxu0 0.0
    %128 = vmatpush1.msra.mxu0 %v100
    %129 = vmatprep.subr.mxu0 0.0
    %130 = vmatpush1.msra.mxu0 %v99
    %131 = vmatprep.subr.mxu0 0.0
    %132 = vmatpush1.msra.mxu0 %v98
    %133 = vmatprep.subr.mxu0 0.0
    %134 = vmatpush1.msra.mxu0 %v97
    %135 = vmatprep.subr.mxu0 0.0
    %136 = vmatpush1.msra.mxu0 %v96
    %137 = vmatprep.subr.mxu0 0.0
    %138 = vmatpush1.msra.mxu0 %v95
    %139 = vmatprep.subr.mxu0 0.0
    %140 = vmatpush1.msra.mxu0 %v94
    %141 = vmatprep.subr.mxu0 0.0
    %142 = vmatpush1.msra.mxu0 %v93
    %143 = vmatprep.subr.mxu0 0.0
    %144 = vmatpush1.msra.mxu0 %v92
    %145 = vmatprep.subr.mxu0 0.0
    %146 = vmatpush1.msra.mxu0 %v91
    %147 = vmatprep.subr.mxu0 0.0
    %148 = vmatpush1.msra.mxu0 %v90
    %149 = vmatprep.subr.mxu0 0.0
    %150 = vmatpush1.msra.mxu0 %v89
    %151 = vmatprep.subr.mxu0 0.0
    %152 = vmatpush1.msra.mxu0 %v88
    %153 = vmatprep.subr.mxu0 0.0
    %154 = vmatpush1.msra.mxu0 %v87
    %155 = vmatprep.subr.mxu0 0.0
    %156 = vmatpush1.msra.mxu0 %v86
    %157 = vmatprep.subr.mxu0 0.0
    %158 = vmatpush2.msra.mxu0 %v117
    %159 = vmatprep.subr.mxu0 0.0
    %160 = vmatpush2.msra.mxu0 %v116
    %161 = vmatprep.subr.mxu0 0.0
    %162 = vmatpush2.msra.mxu0 %v115
    %163 = vmatprep.subr.mxu0 0.0
    %164 = vmatpush2.msra.mxu0 %v114
    %165 = vmatprep.subr.mxu0 0.0
    %166 = vmatpush2.msra.mxu0 %v113
    %167 = vmatprep.subr.mxu0 0.0
    %168 = vmatpush2.msra.mxu0 %v112
    %169 = vmatprep.subr.mxu0 0.0
    %170 = vmatpush2.msra.mxu0 %v111
    %171 = vmatprep.subr.mxu0 0.0
    %172 = vmatpush2.msra.mxu0 %v110
    %173 = vmatprep.subr.mxu0 0.0
    %174 = vmatpush2.msra.mxu0 %v109
    %175 = vmatprep.subr.mxu0 0.0
    %176 = vmatpush2.msra.mxu0 %v108
    %177 = vmatprep.subr.mxu0 0.0
    %178 = vmatpush2.msra.mxu0 %v107
    %179 = vmatprep.subr.mxu0 0.0
    %180 = vmatpush2.msra.mxu0 %v106
    %181 = vmatprep.subr.mxu0 0.0
    %182 = vmatpush2.msra.mxu0 %v105
    %183 = vmatprep.subr.mxu0 0.0
    %184 = vmatpush2.msra.mxu0 %v104
    %185 = vmatprep.subr.mxu0 0.0
    %186 = vmatpush2.msra.mxu0 %v103
    %187 = vmatprep.subr.mxu0 0.0
    %188 = vmatpush2.msra.mxu0 %v102
    %189 = vmatprep.mubr.f32.mxu0 %v83
    %190 = vmatmul.mubr.f32.gmra.mxu0 %v82
    %v191 = vpop.f32.mrf.mxu0
    %v192 = vadd.f32 %v123, %v191
    %v193 = vpop.f32.mrf.mxu0
    %194 = vmatprep.mubr.f32.mxu0 %v85
    %195 = vmatmul.mubr.f32.gmra.mxu0 %v84
    %v196 = vpop.f32.mrf.mxu0
    %v197 = vadd.f32 %v123, %v196
    %v198 = vpop.f32.mrf.mxu0
    %199 = vdwg.mxu0
    %v200 = vmax.f32 %v192, 0.0
    %v201 = vmax.f32 %v197, 0.0
    %v202 = vlaneseq
    %v203 = vshrl.u32 %v202, 7
    %v204 = vadd.s32 %v203, 8
    %vm205 = vcmp.lt.s32.totalorder %v203, 0
    %v206 = vsub.s32 0, %v203
    %v207 = vsel %vm205, %v206, %v203
    %v208 = vshrl.u32 %v207, 3
    %v209 = vand.u32 %v207, 7
    %v210 = vsub.s32 0, %v209
    %v211 = vsel %vm205, %v210, %v209
    %vm212 = vcmp.lt.s32.totalorder %v204, 0
    %v213 = vsub.s32 0, %v204
    %v214 = vsel %vm212, %v213, %v204
    %v215 = vshrl.u32 %v214, 3
    %v216 = vand.u32 %v214, 7
    %v217 = vsub.s32 0, %v216
    %v218 = vsel %vm212, %v217, %v216
    %vm219 = vcmp.ne.s32.totalorder %v211, 0
    %vm220 = vcmp.ne.s32.totalorder %v218, 0
    %vm221 = vcmp.lt.s32.totalorder %v211, 0
    %vm222 = vcmp.lt.s32.totalorder %v218, 0
    %vm223 = vmand %vm221, %vm219
    %vm224 = vmand %vm222, %vm220
    %v225 = vadd.s32 %v211, 8
    %v226 = vadd.s32 %v218, 8
    %v227 = vsel %vm223, %v225, %v211
    %v228 = vsel %vm224, %v226, %v218
    %vm229 = vcmp.ge.s32.totalorder %v22, 0
    %vm230 = vcmp.lt.s32.totalorder %v22, 16
    %vm231 = vmand %vm229, %vm230
    %v232 = vsel %vm231, 7, 0
    %vm233 = vcmp.ge.s32.totalorder %v22, 16
    %vm234 = vcmp.lt.s32.totalorder %v22, 32
    %vm235 = vmand %vm233, %vm234
    %v236 = vsel %vm235, 6, %v232
    %vm237 = vcmp.ge.s32.totalorder %v22, 32
    %vm238 = vcmp.lt.s32.totalorder %v22, 48
    %vm239 = vmand %vm237, %vm238
    %v240 = vsel %vm239, 5, %v236
    %vm241 = vcmp.lt.s32.totalorder %v227, %v240
    %vm242 = vcmp.lt.s32.totalorder %v228, %v240
    %v243 = vsel %vm241, %v200, 0.0
    %v244 = vsel %vm242, %v201, 0.0
    %vm245 = vcmask 392192
    %v246 = vsel %vm245, %v243, -inf
    %v247 = vrot.slane %v246, 4
    %v248 = vmax.f32 %v246, %v247
    %v249 = vrot.slane %v248, 2
    %v250 = vmax.f32 %v248, %v249
    %v251 = vrot.slane %v250, 1
    %v252 = vmax.f32 %v250, %v251
    %v253 = vsel %vm245, %v244, -inf
    %v254 = vrot.slane %v253, 4
    %v255 = vmax.f32 %v253, %v254
    %v256 = vrot.slane %v255, 2
    %v257 = vmax.f32 %v255, %v256
    %v258 = vrot.slane %v257, 1
    %v259 = vmax.f32 %v257, %v258
    %v260 = vld [vmem:[%s3] sm:$0xff]
    %v261 = vld [vmem:[%s3 + $0x8] sm:$0xff]
    %v262 = vld [vmem:[%s3 + $0x10] sm:$0xff]
    %v263 = vld [vmem:[%s3 + $0x18] sm:$0xff]
    %v264 = vld [vmem:[%s3 + $0x20] sm:$0xff]
    %v265 = vld [vmem:[%s3 + $0x28] sm:$0xff]
    %v266 = vld [vmem:[%s4] sm:$0x1]
    %v268 = vlaneseq
    %v269 = vshrl.u32 %v268, 7
    %v270 = vsub.s32 0, %v269
    %v271 = vrot.slane %v266, %v270
    %vm275 = vcmask 1041409
    %v276 = vsel %vm275, %v259, %v252
    %v277 = vsel %vm245, %v276, 0
    %279 = vmatprep.subr.mxu0 0.0
    %280 = vmatpush1.msra.mxu0 0.0
    %281 = vmatprep.subr.mxu0 0.0
    %282 = vmatpush1.msra.mxu0 0.0
    %283 = vmatprep.subr.mxu0 0.0
    %284 = vmatpush1.msra.mxu0 0.0
    %285 = vmatprep.subr.mxu0 0.0
    %286 = vmatpush1.msra.mxu0 0.0
    %287 = vmatprep.subr.mxu0 0.0
    %288 = vmatpush1.msra.mxu0 0.0
    %289 = vmatprep.subr.mxu0 0.0
    %290 = vmatpush1.msra.mxu0 0.0
    %291 = vmatprep.subr.mxu0 0.0
    %292 = vmatpush1.msra.mxu0 0.0
    %293 = vmatprep.subr.mxu0 0.0
    %294 = vmatpush1.msra.mxu0 0.0
    %295 = vmatprep.subr.mxu0 0.0
    %296 = vmatpush1.msra.mxu0 0.0
    %297 = vmatprep.subr.mxu0 0.0
    %298 = vmatpush1.msra.mxu0 0.0
    %299 = vmatprep.subr.mxu0 0.0
    %300 = vmatpush1.msra.mxu0 %v265
    %301 = vmatprep.subr.mxu0 0.0
    %302 = vmatpush1.msra.mxu0 %v264
    %303 = vmatprep.subr.mxu0 0.0
    %304 = vmatpush1.msra.mxu0 %v263
    %305 = vmatprep.subr.mxu0 0.0
    %306 = vmatpush1.msra.mxu0 %v262
    %307 = vmatprep.subr.mxu0 0.0
    %308 = vmatpush1.msra.mxu0 %v261
    %309 = vmatprep.subr.mxu0 0.0
    %310 = vmatpush1.msra.mxu0 %v260
    %311 = vmatprep.subr.mxu0 0.0
    %312 = vmatpush2.msra.mxu0 0.0
    %313 = vmatprep.subr.mxu0 0.0
    %314 = vmatpush2.msra.mxu0 0.0
    %315 = vmatprep.subr.mxu0 0.0
    %316 = vmatpush2.msra.mxu0 0.0
    %317 = vmatprep.subr.mxu0 0.0
    %318 = vmatpush2.msra.mxu0 0.0
    %319 = vmatprep.subr.mxu0 0.0
    %320 = vmatpush2.msra.mxu0 0.0
    %321 = vmatprep.subr.mxu0 0.0
    %322 = vmatpush2.msra.mxu0 0.0
    %323 = vmatprep.subr.mxu0 0.0
    %324 = vmatpush2.msra.mxu0 0.0
    %325 = vmatprep.subr.mxu0 0.0
    %326 = vmatpush2.msra.mxu0 0.0
    %327 = vmatprep.subr.mxu0 0.0
    %328 = vmatpush2.msra.mxu0 0.0
    %329 = vmatprep.subr.mxu0 0.0
    %330 = vmatpush2.msra.mxu0 0.0
    %331 = vmatprep.subr.mxu0 0.0
    %332 = vmatpush2.msra.mxu0 0.0
    %333 = vmatprep.subr.mxu0 0.0
    %334 = vmatpush2.msra.mxu0 0.0
    %335 = vmatprep.subr.mxu0 0.0
    %336 = vmatpush2.msra.mxu0 0.0
    %337 = vmatprep.subr.mxu0 0.0
    %338 = vmatpush2.msra.mxu0 0.0
    %339 = vmatprep.subr.mxu0 0.0
    %340 = vmatpush2.msra.mxu0 0.0
    %341 = vmatprep.subr.mxu0 0.0
    %342 = vmatpush2.msra.mxu0 0.0
    %343 = vmatprep.mubr.f32.mxu0 0.0
    %344 = vmatmul.mubr.f32.gmra.mxu0 %v277
    %v345 = vpop.f32.mrf.mxu0
    %v346 = vadd.f32 %v271, %v345
    %v347 = vpop.f32.mrf.mxu0
    %348 = vdwg.mxu0
    %vm349 = vcmask 25600
    %350 = vst.msk [vmem:[#allocation2] sm:$0x3] %vm349, %v346
    // Predicated region
    $region22: #{textcnn_forward.1} parent=1 // pred_check
      _
    $region23: #{textcnn_forward.1} parent=1 // pred_check_branch
      %352 = sbr.rel (0) target = $region25
    $region24: #{textcnn_forward.1} parent=1 // pred_region
      %s354 = ssub.s32 32, 32
      %355 = vsyncadd [#allocation3], %s354
      %s357 = sshll.u32 [#allocation2], 4
      %s358 = int_to_ptr.vmem [resolvable:$true] %s357
      %360 = dma.vmem_to_hbm [thread:$0]  %s358, 32, %s5, [#allocation3]
    $region25: #{textcnn_forward.1} parent=1 // pred_fallthru
      _
    // Predicated region
    $region26: #{textcnn_forward.1} parent=1 // pred_check
      _
    $region27: #{textcnn_forward.1} parent=1 // pred_check_branch
      %362 = sbr.rel (0) target = $region29
    $region28: #{textcnn_forward.1} parent=1 // pred_region
      %363 = dma.done [#allocation3], 32
    $region29: #{textcnn_forward.1} parent=1 // pred_fallthru
      _
    %364 = vsyncpa [#allocation3], 1

</llo_original>
